<compile_context>
chip_gen: v7x
topology: tpu7x:2x2x1
jax: 0.10.0
libtpu: 0.0.40
codegen_flags: <defaults>
</compile_context>

<pallas_src>
import math
import numpy as np
import jax
import jax.numpy as jnp
from jax import lax
from jax.experimental import pallas as pl
from jax.experimental.pallas import tpu as pltpu

# ----------------------------- small config ---------------------------------
B, E, S = 2, 32, 17           # batch, embeddings_dim, sequence length
L = S - 1                     # emb1 length
K = 9                         # conv kernel_size
PAD = K // 2
OUT_DIM = 2
H = E // 2                    # MLP hidden
E2 = E // 2                   # length after MaxPool1d(2)
EPS = 1e-5
BN_SCALE = 1.0 / math.sqrt(1.0 + EPS)   # eval-mode BatchNorm: x / sqrt(var+eps)
NEG = -1000000.0                        # masked_softmax fill value (as in torch code)

KE = K * E                    # 288: im2col contraction size
C4 = 4 * E                    # 128: flattened resnet (channels x length)
P2 = 4 * E2                   # 64:  flattened pooled (channels x length/2)

# slab A (bf16, width 2E=64): rows [0:KE)=stage-1 stacked conv W, [KE:KE+E)=mean bands
ROWS_A = KE + E                                        # 320
# slab B (bf16, width 4E=128): conv1 bands | replication | conv2 | maxpool | mlp
OFF_T1 = 0
OFF_REP = E                                            # 32
OFF_W2 = 2 * E                                         # 64
OFF_PP = 2 * E + C4                                    # 192
OFF_L1 = 2 * E + 2 * C4                                # 320
OFF_L2 = OFF_L1 + P2                                   # 384
ROWS_B = OFF_L2 + H                                    # 400   (all offsets are x8)


# ----------------------------- fused kernel ---------------------------------
def fused_kernel(valid_ref, xcol_ref, x2_ref, wa_ref, wb_ref, bias_ref, o_ref):
    f32 = jnp.float32
    bf16 = jnp.bfloat16

    # ---- stage 1: feature_conv + attention_conv for BOTH batches as ONE
    #      (B*L, K*E) @ (K*E, 2E) bf16 matmul; masked softmax over the sequence
    #      (sublane) axis; attention-weighted sum -> (B, E)
    xc = xcol_ref[...]                                        # bf16 (B*L, K*E)
    ws1 = wa_ref[0:KE, :]                                     # (K*E, 2E)
    bs1 = bias_ref[0:1, 0:2 * E]                              # (1, 2E) f32
    fa = jnp.dot(xc, ws1, preferred_element_type=f32) + bs1   # (B*L, 2E)
    fa = fa.reshape(B, L, 2 * E)
    feat = fa[:, :, :E]                                       # (B, L, E)
    attn = fa[:, :, E:]                                       # (B, L, E)

    pos = lax.broadcasted_iota(jnp.int32, (B, L, E), 1)
    bidx = lax.broadcasted_iota(jnp.int32, (B, L, E), 0)
    vlen = jnp.full((B, L, E), valid_ref[B - 1], jnp.int32)   # per-batch valid length
    for b in range(B - 1):
        vlen = jnp.where(bidx == b, valid_ref[b], vlen)
    attn = jnp.where(pos < vlen, attn, NEG)                   # masked softmax fill

    mmax = jnp.max(attn, axis=1, keepdims=True)
    pexp = jnp.exp(attn - mmax)
    num = jnp.sum(feat * pexp, axis=1)                        # (B, E) deferred norm
    den = jnp.sum(pexp, axis=1)                               # (B, E)
    ea = num * pl.reciprocal(den, approx=True)                # EUP vrcp

    # ---- stage 2: mean conv / mean attention (packed banded matmul) + softmax over E
    x2 = x2_ref[...]                                          # bf16 (B, E)
    wm = wa_ref[KE:KE + E, :]                                 # (E, 2E)
    bm = bias_ref[1:2, 0:2 * E]
    mm = jnp.dot(x2, wm, preferred_element_type=f32) + bm     # (B, 2E)
    ms = mm[:, :E]
    ma = mm[:, E:]
    ma = ma - jnp.max(ma, axis=-1, keepdims=True)
    pa = jnp.exp(ma)
    soft2 = pa * pl.reciprocal(jnp.sum(pa, axis=-1, keepdims=True), approx=True)
    v = ea + ms * soft2                                       # (B, E) f32

    # ---- LayerNorm over the (1, E) slice (fresh nn.LayerNorm: weight=1, bias=0)
    mu = jnp.mean(v, axis=-1, keepdims=True)
    var = jnp.mean((v - mu) ** 2, axis=-1, keepdims=True)
    y = ((v - mu) * lax.rsqrt(var + EPS)).astype(bf16)        # (B, E)

    # ---- resnet block: conv1(1->4) -> BN(eval) -> ReLU -> conv2(4->4), + skip, ReLU
    t1 = wb_ref[OFF_T1:OFF_T1 + E, :]                         # (E, 4E) conv1 bands
    rep = wb_ref[OFF_REP:OFF_REP + E, :]                      # (E, 4E) channel replication
    w2p = wb_ref[OFF_W2:OFF_W2 + C4, :]                       # (4E, 4E) conv2 bands
    b1r = bias_ref[2:3, :]
    b2r = bias_ref[3:4, :]
    z1 = jnp.dot(y, t1, preferred_element_type=f32) + b1r
    h1 = jnp.maximum(z1 * BN_SCALE, 0.0)                      # BN(eval) + ReLU
    yrep = jnp.dot(y, rep, preferred_element_type=f32)        # y replicated over 4 channels
    h2 = jnp.dot(h1.astype(bf16), w2p, preferred_element_type=f32) + b2r
    act = jnp.maximum(h2 + yrep, 0.0)                         # (B, 4E)

    # ---- MaxPool1d(2) via pair-sum/pair-diff matmul (channel-major flatten), MLP
    pp = wb_ref[OFF_PP:OFF_PP + C4, :]                        # (4E, 2*P2)
    pool = jnp.dot(act.astype(bf16), pp, preferred_element_type=f32)
    pooled = 0.5 * (pool[:, :P2] + jnp.abs(pool[:, P2:]))     # max(a,b)=(a+b+|a-b|)/2
    wl1 = wb_ref[OFF_L1:OFF_L1 + P2, 0:H]
    bl1 = bias_ref[4:5, 0:H]
    hid = jnp.dot(pooled.astype(bf16), wl1, preferred_element_type=f32) + bl1
    hid = jnp.maximum(hid, 0.0) * BN_SCALE                    # ReLU -> BN(eval)
    wl2 = wb_ref[OFF_L2:OFF_L2 + H, 0:OUT_DIM]
    bl2 = bias_ref[5:6, 0:OUT_DIM]
    o_ref[...] = jnp.dot(hid.astype(bf16), wl2, preferred_element_type=f32) + bl2


# --------------------- one-time host-side weight packing --------------------
def band_matrix_np(taps, n):
    # T[j + dk - pad, j] = taps[dk]  =>  (x_row @ T) == conv1d(x, taps, padding=pad)
    k = taps.shape[0]
    pad = k // 2
    t = np.zeros((n, n), np.float32)
    for dk in range(k):
        t += float(taps[dk]) * np.eye(n, k=-(dk - pad), dtype=np.float32)
    return t


def pool_matrices_np():
    # act flat lane index = c*E + j ; pooled lane index = c*E2 + m (channel-major flatten)
    psum = np.zeros((C4, P2), np.float32)
    pdif = np.zeros((C4, P2), np.float32)
    for c in range(4):
        for m in range(E2):
            psum[c * E + 2 * m, c * E2 + m] = 1.0
            psum[c * E + 2 * m + 1, c * E2 + m] = 1.0
            pdif[c * E + 2 * m, c * E2 + m] = 1.0
            pdif[c * E + 2 * m + 1, c * E2 + m] = -1.0
    return np.concatenate([psum, pdif], axis=1)               # (4E, 2*P2)


def prepare_params(p):
    """Pack ALL module weights into 3 lane-dense kernel slabs (runs ONCE, host-side)."""
    q = {k: np.asarray(v, np.float32) for k, v in p.items()}

    # slab A (width 2E): stage-1 stacked conv weights + mean conv/attn band matrices
    slab_a = np.zeros((ROWS_A, 2 * E), np.float32)
    slab_a[:KE, :E] = np.transpose(q["wf"], (2, 1, 0)).reshape(KE, E)
    slab_a[:KE, E:] = np.transpose(q["wa"], (2, 1, 0)).reshape(KE, E)
    slab_a[KE:, :E] = band_matrix_np(q["wmc"][0, 0], E)
    slab_a[KE:, E:] = band_matrix_np(q["wma"][0, 0], E)

    # slab B (width 4E): resnet conv1 bands | replication | conv2 | maxpool | mlp
    slab_b = np.zeros((ROWS_B, C4), np.float32)
    for co in range(4):
        slab_b[OFF_T1:OFF_T1 + E, co * E:(co + 1) * E] = band_matrix_np(q["w1"][co, 0], E)
        slab_b[OFF_REP:OFF_REP + E, co * E:(co + 1) * E] = np.eye(E, dtype=np.float32)
        for ci in range(4):
            slab_b[OFF_W2 + ci * E:OFF_W2 + (ci + 1) * E, co * E:(co + 1) * E] = \
                band_matrix_np(q["w2"][co, ci], E)
    slab_b[OFF_PP:OFF_PP + C4, :] = pool_matrices_np()
    slab_b[OFF_L1:OFF_L1 + P2, :H] = q["lw1"].T
    slab_b[OFF_L2:OFF_L2 + H, :OUT_DIM] = q["lw2"].T

    # all biases in a single (8, 128) f32 block
    biases = np.zeros((8, C4), np.float32)
    biases[0, :E] = q["bf"]
    biases[0, E:2 * E] = q["ba"]
    biases[1, :E] = q["bmc"][0]
    biases[1, E:2 * E] = q["bma"][0]
    biases[2, :] = np.repeat(q["b1"], E)
    biases[3, :] = np.repeat(q["b2"], E)
    biases[4, :H] = q["lb1"]
    biases[5, :OUT_DIM] = q["lb2"]

    return dict(slab_a=jnp.asarray(slab_a, jnp.bfloat16),
                slab_b=jnp.asarray(slab_b, jnp.bfloat16),
                biases=jnp.asarray(biases, jnp.float32))


# ----------------------------- forward wrapper -------------------------------
def t4attention_forward(emb, seq_len, packed):
    bf16 = jnp.bfloat16
    emb1 = emb[:, :, :L]                                       # (B, E, L)
    x2 = emb[:, :, L].astype(bf16)                             # (B, E) last position

    # stage-1 im2col (seq-major, bf16): xcol[b*L+l, dk*E+ci] = pad(emb1)[b, ci, l+dk]
    xp = jnp.pad(emb1, ((0, 0), (0, 0), (PAD, PAD)))           # (B, E, L + 2*PAD)
    xcol = jnp.stack([xp[:, :, dk:dk + L] for dk in range(K)], axis=1)   # (B, K, E, L)
    xcol = jnp.transpose(xcol, (0, 3, 1, 2)).reshape(B * L, KE).astype(bf16)

    const = lambda i, vl: (0, 0)
    out = pl.pallas_call(
        fused_kernel,
        out_shape=jax.ShapeDtypeStruct((B, OUT_DIM), jnp.float32),
        grid_spec=pltpu.PrefetchScalarGridSpec(
            num_scalar_prefetch=1,
            grid=(1,),                                 # collapsed grid: both batches at once
            in_specs=[
                pl.BlockSpec((B * L, KE), const),      # im2col activations (bf16)
                pl.BlockSpec((B, E), const),           # last-position slice (bf16)
                pl.BlockSpec((ROWS_A, 2 * E), const),  # slab A: stage-1 + mean weights
                pl.BlockSpec((ROWS_B, C4), const),     # slab B: resnet / pool / MLP weights
                pl.BlockSpec((8, C4), const),          # all biases (one f32 block)
            ],
            out_specs=pl.BlockSpec((B, OUT_DIM), const),
        ),
        compiler_params=pltpu.CompilerParams(dimension_semantics=("arbitrary",)),
    )(seq_len.astype(jnp.int32), xcol, x2,
      packed["slab_a"], packed["slab_b"], packed["biases"])
    return out


# ----------------------------- pure-JAX reference ---------------------------
def conv1d_ref(x, w, b):
    pad = w.shape[-1] // 2
    y = lax.conv_general_dilated(x, w, window_strides=(1,), padding=[(pad, pad)],
                                 dimension_numbers=("NCH", "OIH", "NCH"))
    return y + b[None, :, None]


def ref_forward(emb, seq_len, p):
    emb1 = emb[:, :, :L]
    emb2 = emb[:, :, L][:, None, :]
    inter = conv1d_ref(emb1, p["wf"], p["bf"])
    attn = conv1d_ref(emb1, p["wa"], p["ba"])
    mask = jnp.arange(L)[None, None, :] < seq_len[:, None, None]
    soft = jax.nn.softmax(jnp.where(mask, attn, NEG), axis=-1)
    ea = jnp.sum(inter * soft, axis=-1)[:, None, :]
    ms = conv1d_ref(emb2, p["wmc"], p["bmc"])
    ma = conv1d_ref(emb2, p["wma"], p["bma"])
    v = ea + ms * jax.nn.softmax(ma, axis=-1)
    mu = jnp.mean(v, axis=(1, 2), keepdims=True)
    var = jnp.mean((v - mu) ** 2, axis=(1, 2), keepdims=True)
    y = (v - mu) / jnp.sqrt(var + EPS)
    h1 = jnp.maximum(conv1d_ref(y, p["w1"], p["b1"]) * BN_SCALE, 0.0)
    h2 = conv1d_ref(h1, p["w2"], p["b2"])
    act = jnp.maximum(h2 + y, 0.0)
    pooled = jnp.max(act.reshape(B, 4, E2, 2), axis=-1)
    flat = pooled.reshape(B, -1)
    hid = jnp.maximum(flat @ p["lw1"].T + p["lb1"], 0.0) * BN_SCALE
    return hid @ p["lw2"].T + p["lb2"]


def init_params(key):
    ks = jax.random.split(key, 16)

    def w(i, shape, scale=0.05):
        return jax.random.normal(ks[i], shape, jnp.float32) * scale

    return dict(
        wf=w(0, (E, E, K)), bf=w(1, (E,)),                 # feature_conv
        wa=w(2, (E, E, K)), ba=w(3, (E,)),                 # attention_conv
        wmc=w(4, (1, 1, K), 0.2), bmc=w(5, (1,), 0.2),     # mean_convolution
        wma=w(6, (1, 1, K), 0.2), bma=w(7, (1,), 0.2),     # mean_attention
        w1=w(8, (4, 1, 3), 0.3), b1=w(9, (4,), 0.1),       # resnet conv1
        w2=w(10, (4, 4, 3), 0.3), b2=w(11, (4,), 0.1),     # resnet conv2
        lw1=w(12, (H, P2), 0.1), lb1=w(13, (H,), 0.1),     # mlp linear1
        lw2=w(14, (OUT_DIM, H), 0.1), lb2=w(15, (OUT_DIM,), 0.1),  # mlp linear2
    )


# ----------------------------------- main ------------------------------------
if __name__ == "__main__":
    key = jax.random.PRNGKey(0)
    kp, kx = jax.random.split(key)
    params = init_params(kp)
    packed = prepare_params(params)                        # one-time packing (hoisted)
    emb = jax.random.normal(kx, (B, E, S), jnp.float32)    # (2, 32, 17)
    seq_len = jnp.array([5, 12], dtype=jnp.int32)

    fwd = jax.jit(t4attention_forward)
    out = jax.block_until_ready(fwd(emb, seq_len, packed))

    ref = ref_forward(emb, seq_len, params)
    np.testing.assert_allclose(np.asarray(out), np.asarray(ref), rtol=2e-2, atol=2e-2)
    print("KERNEL_OK")
</pallas_src>

<mosaic_0001>
module attributes {stable_mosaic.version = 11 : i64} {
  func.func @fused_kernel(%arg0: i32, %arg1: memref<2xi32, #tpu.memory_space<smem>>, %arg2: memref<32x288xbf16, #tpu.memory_space<vmem>>, %arg3: memref<2x32xbf16, #tpu.memory_space<vmem>>, %arg4: memref<320x64xbf16, #tpu.memory_space<vmem>>, %arg5: memref<400x128xbf16, #tpu.memory_space<vmem>>, %arg6: memref<8x128xf32, #tpu.memory_space<vmem>>, %arg7: memref<2x2xf32, #tpu.memory_space<vmem>>) attributes {dimension_semantics = [#tpu.dimension_semantics<arbitrary>], iteration_bounds = array<i64: 1>, scalar_prefetch = 1 : i64, scratch_operands = 0 : i64, tpu.core_type = #tpu.core_type<tc>, window_params = [{pipeline_mode = #tpu.pipeline_mode<synchronous>, transform_indices = @transform_0, window_bounds = array<i64: 32, 288>}, {pipeline_mode = #tpu.pipeline_mode<synchronous>, transform_indices = @transform_1, window_bounds = array<i64: 2, 32>}, {pipeline_mode = #tpu.pipeline_mode<synchronous>, transform_indices = @transform_2, window_bounds = array<i64: 320, 64>}, {pipeline_mode = #tpu.pipeline_mode<synchronous>, transform_indices = @transform_3, window_bounds = array<i64: 400, 128>}, {pipeline_mode = #tpu.pipeline_mode<synchronous>, transform_indices = @transform_4, window_bounds = array<i64: 8, 128>}, {pipeline_mode = #tpu.pipeline_mode<synchronous>, transform_indices = @transform_5, window_bounds = array<i64: 2, 2>}]} {
    %c0 = arith.constant 0 : index
    %c0_0 = arith.constant 0 : index
    %0 = vector.load %arg2[%c0, %c0_0] : memref<32x288xbf16, #tpu.memory_space<vmem>>, vector<32x288xbf16>
    %c0_1 = arith.constant 0 : index
    %c0_2 = arith.constant 0 : index
    %1 = vector.load %arg4[%c0_1, %c0_2] : memref<320x64xbf16, #tpu.memory_space<vmem>>, vector<288x64xbf16>
    %c0_3 = arith.constant 0 : index
    %c0_4 = arith.constant 0 : index
    %2 = vector.load %arg6[%c0_3, %c0_4] : memref<8x128xf32, #tpu.memory_space<vmem>>, vector<1x64xf32>
    %cst = arith.constant dense<0.000000e+00> : vector<32x64xf32>
    %3 = tpu.matmul %0, %1, %cst {dimension_numbers = #tpu.dot_dimension_numbers<[1], [0], [0], [1], [0, 0, 1, 1], [], []>} : vector<32x288xbf16>, vector<288x64xbf16>, vector<32x64xf32> -> vector<32x64xf32>
    %4 = vector.broadcast %2 : vector<1x64xf32> to vector<32x64xf32>
    %5 = arith.addf %3, %4 : vector<32x64xf32>
    %6 = vector.shape_cast %5 : vector<32x64xf32> to vector<2x16x64xf32>
    %7 = vector.extract_strided_slice %6 {offsets = [0, 0, 0], sizes = [2, 16, 32], strides = [1, 1, 1]} : vector<2x16x64xf32> to vector<2x16x32xf32>
    %8 = vector.extract_strided_slice %6 {offsets = [0, 0, 32], sizes = [2, 16, 32], strides = [1, 1, 1]} : vector<2x16x64xf32> to vector<2x16x32xf32>
    %9 = tpu.iota {dimensions = array<i32: 1>} : vector<2x16x32xi32>
    %10 = tpu.iota {dimensions = array<i32: 0>} : vector<2x16x32xi32>
    %c1 = arith.constant 1 : index
    %11 = memref.load %arg1[%c1] : memref<2xi32, #tpu.memory_space<smem>>
    %12 = vector.broadcast %11 : i32 to vector<2x16x32xi32>
    %c0_i32 = arith.constant 0 : i32
    %13 = vector.broadcast %c0_i32 : i32 to vector<2x16x32xi32>
    %14 = arith.cmpi eq, %10, %13 : vector<2x16x32xi32>
    %c0_5 = arith.constant 0 : index
    %15 = memref.load %arg1[%c0_5] : memref<2xi32, #tpu.memory_space<smem>>
    %16 = vector.broadcast %15 : i32 to vector<2x16x32xi32>
    %17 = arith.select %14, %16, %12 : vector<2x16x32xi1>, vector<2x16x32xi32>
    %18 = arith.cmpi slt, %9, %17 : vector<2x16x32xi32>
    %cst_6 = arith.constant -1.000000e+06 : f32
    %19 = vector.broadcast %cst_6 : f32 to vector<2x16x32xf32>
    %20 = arith.select %18, %8, %19 : vector<2x16x32xi1>, vector<2x16x32xf32>
    %cst_7 = arith.constant dense<0xFF800000> : vector<2x32xf32>
    %21 = vector.multi_reduction <maximumf>, %20, %cst_7 [1] : vector<2x16x32xf32> to vector<2x32xf32>
    %22 = vector.shape_cast %21 : vector<2x32xf32> to vector<2x1x32xf32>
    %23 = vector.broadcast %22 : vector<2x1x32xf32> to vector<2x16x32xf32>
    %24 = arith.subf %20, %23 : vector<2x16x32xf32>
    %25 = math.exp %24 : vector<2x16x32xf32>
    %26 = arith.mulf %7, %25 : vector<2x16x32xf32>
    %cst_8 = arith.constant dense<0.000000e+00> : vector<2x32xf32>
    %27 = vector.multi_reduction <add>, %26, %cst_8 [1] : vector<2x16x32xf32> to vector<2x32xf32>
    %cst_9 = arith.constant dense<0.000000e+00> : vector<2x32xf32>
    %28 = vector.multi_reduction <add>, %25, %cst_9 [1] : vector<2x16x32xf32> to vector<2x32xf32>
    %29 = tpu.reciprocal %28 {approx = true} : vector<2x32xf32> -> vector<2x32xf32>
    %30 = arith.mulf %27, %29 : vector<2x32xf32>
    %c0_10 = arith.constant 0 : index
    %c0_11 = arith.constant 0 : index
    %31 = vector.load %arg3[%c0_10, %c0_11] : memref<2x32xbf16, #tpu.memory_space<vmem>>, vector<2x32xbf16>
    %c288 = arith.constant 288 : index
    %c0_12 = arith.constant 0 : index
    %32 = vector.load %arg4[%c288, %c0_12] : memref<320x64xbf16, #tpu.memory_space<vmem>>, vector<32x64xbf16>
    %c1_13 = arith.constant 1 : index
    %c0_14 = arith.constant 0 : index
    %33 = vector.load %arg6[%c1_13, %c0_14] : memref<8x128xf32, #tpu.memory_space<vmem>>, vector<1x64xf32>
    %cst_15 = arith.constant dense<0.000000e+00> : vector<2x64xf32>
    %34 = tpu.matmul %31, %32, %cst_15 {dimension_numbers = #tpu.dot_dimension_numbers<[1], [0], [0], [1], [0, 0, 1, 1], [], []>} : vector<2x32xbf16>, vector<32x64xbf16>, vector<2x64xf32> -> vector<2x64xf32>
    %35 = vector.broadcast %33 : vector<1x64xf32> to vector<2x64xf32>
    %36 = arith.addf %34, %35 : vector<2x64xf32>
    %37 = vector.extract_strided_slice %36 {offsets = [0, 0], sizes = [2, 32], strides = [1, 1]} : vector<2x64xf32> to vector<2x32xf32>
    %38 = vector.extract_strided_slice %36 {offsets = [0, 32], sizes = [2, 32], strides = [1, 1]} : vector<2x64xf32> to vector<2x32xf32>
    %cst_16 = arith.constant dense<0xFF800000> : vector<2xf32>
    %39 = vector.multi_reduction <maximumf>, %38, %cst_16 [1] : vector<2x32xf32> to vector<2xf32>
    %40 = vector.shape_cast %39 : vector<2xf32> to vector<2x1xf32>
    %41 = vector.broadcast %40 : vector<2x1xf32> to vector<2x32xf32>
    %42 = arith.subf %38, %41 : vector<2x32xf32>
    %43 = math.exp %42 : vector<2x32xf32>
    %cst_17 = arith.constant dense<0.000000e+00> : vector<2xf32>
    %44 = vector.multi_reduction <add>, %43, %cst_17 [1] : vector<2x32xf32> to vector<2xf32>
    %45 = vector.shape_cast %44 : vector<2xf32> to vector<2x1xf32>
    %46 = tpu.reciprocal %45 {approx = true} : vector<2x1xf32> -> vector<2x1xf32>
    %47 = vector.broadcast %46 : vector<2x1xf32> to vector<2x32xf32>
    %48 = arith.mulf %43, %47 : vector<2x32xf32>
    %49 = arith.mulf %37, %48 : vector<2x32xf32>
    %50 = arith.addf %30, %49 : vector<2x32xf32>
    %cst_18 = arith.constant dense<0.000000e+00> : vector<2xf32>
    %51 = vector.multi_reduction <add>, %50, %cst_18 [1] : vector<2x32xf32> to vector<2xf32>
    %52 = vector.shape_cast %51 : vector<2xf32> to vector<2x1xf32>
    %cst_19 = arith.constant 3.200000e+01 : f32
    %53 = vector.broadcast %cst_19 : f32 to vector<2x1xf32>
    %54 = arith.divf %52, %53 : vector<2x1xf32>
    %55 = vector.broadcast %54 : vector<2x1xf32> to vector<2x32xf32>
    %56 = arith.subf %50, %55 : vector<2x32xf32>
    %57 = arith.mulf %56, %56 : vector<2x32xf32>
    %cst_20 = arith.constant dense<0.000000e+00> : vector<2xf32>
    %58 = vector.multi_reduction <add>, %57, %cst_20 [1] : vector<2x32xf32> to vector<2xf32>
    %59 = vector.shape_cast %58 : vector<2xf32> to vector<2x1xf32>
    %cst_21 = arith.constant 3.200000e+01 : f32
    %60 = vector.broadcast %cst_21 : f32 to vector<2x1xf32>
    %61 = arith.divf %59, %60 : vector<2x1xf32>
    %62 = vector.broadcast %54 : vector<2x1xf32> to vector<2x32xf32>
    %63 = arith.subf %50, %62 : vector<2x32xf32>
    %cst_22 = arith.constant 9.99999974E-6 : f32
    %64 = vector.broadcast %cst_22 : f32 to vector<2x1xf32>
    %65 = arith.addf %61, %64 : vector<2x1xf32>
    %66 = math.rsqrt %65 : vector<2x1xf32>
    %67 = vector.broadcast %66 : vector<2x1xf32> to vector<2x32xf32>
    %68 = arith.mulf %63, %67 : vector<2x32xf32>
    %69 = arith.truncf %68 : vector<2x32xf32> to vector<2x32xbf16>
    %c0_23 = arith.constant 0 : index
    %c0_24 = arith.constant 0 : index
    %70 = vector.load %arg5[%c0_23, %c0_24] : memref<400x128xbf16, #tpu.memory_space<vmem>>, vector<32x128xbf16>
    %c32 = arith.constant 32 : index
    %c0_25 = arith.constant 0 : index
    %71 = vector.load %arg5[%c32, %c0_25] : memref<400x128xbf16, #tpu.memory_space<vmem>>, vector<32x128xbf16>
    %c64 = arith.constant 64 : index
    %c0_26 = arith.constant 0 : index
    %72 = vector.load %arg5[%c64, %c0_26] : memref<400x128xbf16, #tpu.memory_space<vmem>>, vector<128x128xbf16>
    %c2 = arith.constant 2 : index
    %c0_27 = arith.constant 0 : index
    %73 = vector.load %arg6[%c2, %c0_27] : memref<8x128xf32, #tpu.memory_space<vmem>>, vector<1x128xf32>
    %c3 = arith.constant 3 : index
    %c0_28 = arith.constant 0 : index
    %74 = vector.load %arg6[%c3, %c0_28] : memref<8x128xf32, #tpu.memory_space<vmem>>, vector<1x128xf32>
    %cst_29 = arith.constant dense<0.000000e+00> : vector<2x128xf32>
    %75 = tpu.matmul %69, %70, %cst_29 {dimension_numbers = #tpu.dot_dimension_numbers<[1], [0], [0], [1], [0, 0, 1, 1], [], []>} : vector<2x32xbf16>, vector<32x128xbf16>, vector<2x128xf32> -> vector<2x128xf32>
    %76 = vector.broadcast %73 : vector<1x128xf32> to vector<2x128xf32>
    %77 = arith.addf %75, %76 : vector<2x128xf32>
    %cst_30 = arith.constant 0.999994993 : f32
    %78 = vector.broadcast %cst_30 : f32 to vector<2x128xf32>
    %79 = arith.mulf %77, %78 : vector<2x128xf32>
    %cst_31 = arith.constant 0.000000e+00 : f32
    %80 = vector.broadcast %cst_31 : f32 to vector<2x128xf32>
    %81 = arith.maximumf %79, %80 : vector<2x128xf32>
    %cst_32 = arith.constant dense<0.000000e+00> : vector<2x128xf32>
    %82 = tpu.matmul %69, %71, %cst_32 {dimension_numbers = #tpu.dot_dimension_numbers<[1], [0], [0], [1], [0, 0, 1, 1], [], []>} : vector<2x32xbf16>, vector<32x128xbf16>, vector<2x128xf32> -> vector<2x128xf32>
    %83 = arith.truncf %81 : vector<2x128xf32> to vector<2x128xbf16>
    %cst_33 = arith.constant dense<0.000000e+00> : vector<2x128xf32>
    %84 = tpu.matmul %83, %72, %cst_33 {dimension_numbers = #tpu.dot_dimension_numbers<[1], [0], [0], [1], [0, 0, 1, 1], [], []>} : vector<2x128xbf16>, vector<128x128xbf16>, vector<2x128xf32> -> vector<2x128xf32>
    %85 = vector.broadcast %74 : vector<1x128xf32> to vector<2x128xf32>
    %86 = arith.addf %84, %85 : vector<2x128xf32>
    %87 = arith.addf %86, %82 : vector<2x128xf32>
    %cst_34 = arith.constant 0.000000e+00 : f32
    %88 = vector.broadcast %cst_34 : f32 to vector<2x128xf32>
    %89 = arith.maximumf %87, %88 : vector<2x128xf32>
    %c192 = arith.constant 192 : index
    %c0_35 = arith.constant 0 : index
    %90 = vector.load %arg5[%c192, %c0_35] : memref<400x128xbf16, #tpu.memory_space<vmem>>, vector<128x128xbf16>
    %91 = arith.truncf %89 : vector<2x128xf32> to vector<2x128xbf16>
    %cst_36 = arith.constant dense<0.000000e+00> : vector<2x128xf32>
    %92 = tpu.matmul %91, %90, %cst_36 {dimension_numbers = #tpu.dot_dimension_numbers<[1], [0], [0], [1], [0, 0, 1, 1], [], []>} : vector<2x128xbf16>, vector<128x128xbf16>, vector<2x128xf32> -> vector<2x128xf32>
    %93 = vector.extract_strided_slice %92 {offsets = [0, 0], sizes = [2, 64], strides = [1, 1]} : vector<2x128xf32> to vector<2x64xf32>
    %94 = vector.extract_strided_slice %92 {offsets = [0, 64], sizes = [2, 64], strides = [1, 1]} : vector<2x128xf32> to vector<2x64xf32>
    %95 = math.absf %94 : vector<2x64xf32>
    %96 = arith.addf %93, %95 : vector<2x64xf32>
    %cst_37 = arith.constant 5.000000e-01 : f32
    %97 = vector.broadcast %cst_37 : f32 to vector<2x64xf32>
    %98 = arith.mulf %97, %96 : vector<2x64xf32>
    %c320 = arith.constant 320 : index
    %c0_38 = arith.constant 0 : index
    %99 = vector.load %arg5[%c320, %c0_38] : memref<400x128xbf16, #tpu.memory_space<vmem>>, vector<64x16xbf16>
    %c4 = arith.constant 4 : index
    %c0_39 = arith.constant 0 : index
    %100 = vector.load %arg6[%c4, %c0_39] : memref<8x128xf32, #tpu.memory_space<vmem>>, vector<1x16xf32>
    %101 = arith.truncf %98 : vector<2x64xf32> to vector<2x64xbf16>
    %cst_40 = arith.constant dense<0.000000e+00> : vector<2x16xf32>
    %102 = tpu.matmul %101, %99, %cst_40 {dimension_numbers = #tpu.dot_dimension_numbers<[1], [0], [0], [1], [0, 0, 1, 1], [], []>} : vector<2x64xbf16>, vector<64x16xbf16>, vector<2x16xf32> -> vector<2x16xf32>
    %103 = vector.broadcast %100 : vector<1x16xf32> to vector<2x16xf32>
    %104 = arith.addf %102, %103 : vector<2x16xf32>
    %cst_41 = arith.constant 0.000000e+00 : f32
    %105 = vector.broadcast %cst_41 : f32 to vector<2x16xf32>
    %106 = arith.maximumf %104, %105 : vector<2x16xf32>
    %cst_42 = arith.constant 0.999994993 : f32
    %107 = vector.broadcast %cst_42 : f32 to vector<2x16xf32>
    %108 = arith.mulf %106, %107 : vector<2x16xf32>
    %c384 = arith.constant 384 : index
    %c0_43 = arith.constant 0 : index
    %109 = vector.load %arg5[%c384, %c0_43] : memref<400x128xbf16, #tpu.memory_space<vmem>>, vector<16x2xbf16>
    %c5 = arith.constant 5 : index
    %c0_44 = arith.constant 0 : index
    %110 = vector.load %arg6[%c5, %c0_44] : memref<8x128xf32, #tpu.memory_space<vmem>>, vector<1x2xf32>
    %111 = arith.truncf %108 : vector<2x16xf32> to vector<2x16xbf16>
    %cst_45 = arith.constant dense<0.000000e+00> : vector<2x2xf32>
    %112 = tpu.matmul %111, %109, %cst_45 {dimension_numbers = #tpu.dot_dimension_numbers<[1], [0], [0], [1], [0, 0, 1, 1], [], []>} : vector<2x16xbf16>, vector<16x2xbf16>, vector<2x2xf32> -> vector<2x2xf32>
    %113 = vector.broadcast %110 : vector<1x2xf32> to vector<2x2xf32>
    %114 = arith.addf %112, %113 : vector<2x2xf32>
    %c0_46 = arith.constant 0 : index
    %c0_47 = arith.constant 0 : index
    %115 = vector.load %arg7[%c0_46, %c0_47] : memref<2x2xf32, #tpu.memory_space<vmem>>, vector<2x2xf32>
    tpu.vector_store %arg7[%c0_46, %c0_47], %114 {strides = array<i32>} : memref<2x2xf32, #tpu.memory_space<vmem>>, vector<2x2xf32>,
    return
  }
  func.func @transform_0(%arg0: i32, %arg1: memref<2xi32, #tpu.memory_space<smem>>) -> (i32, i32) {
    %c0_i32 = arith.constant 0 : i32
    %c0_i32_0 = arith.constant 0 : i32
    %c0_i32_1 = arith.constant 0 : i32
    return %c0_i32, %c0_i32_0 : i32, i32
  }
  func.func @transform_1(%arg0: i32, %arg1: memref<2xi32, #tpu.memory_space<smem>>) -> (i32, i32) {
    %c0_i32 = arith.constant 0 : i32
    %c0_i32_0 = arith.constant 0 : i32
    %c0_i32_1 = arith.constant 0 : i32
    return %c0_i32, %c0_i32_0 : i32, i32
  }
  func.func @transform_2(%arg0: i32, %arg1: memref<2xi32, #tpu.memory_space<smem>>) -> (i32, i32) {
    %c0_i32 = arith.constant 0 : i32
    %c0_i32_0 = arith.constant 0 : i32
    %c0_i32_1 = arith.constant 0 : i32
    return %c0_i32, %c0_i32_0 : i32, i32
  }
  func.func @transform_3(%arg0: i32, %arg1: memref<2xi32, #tpu.memory_space<smem>>) -> (i32, i32) {
    %c0_i32 = arith.constant 0 : i32
    %c0_i32_0 = arith.constant 0 : i32
    %c0_i32_1 = arith.constant 0 : i32
    return %c0_i32, %c0_i32_0 : i32, i32
  }
  func.func @transform_4(%arg0: i32, %arg1: memref<2xi32, #tpu.memory_space<smem>>) -> (i32, i32) {
    %c0_i32 = arith.constant 0 : i32
    %c0_i32_0 = arith.constant 0 : i32
    %c0_i32_1 = arith.constant 0 : i32
    return %c0_i32, %c0_i32_0 : i32, i32
  }
  func.func @transform_5(%arg0: i32, %arg1: memref<2xi32, #tpu.memory_space<smem>>) -> (i32, i32) {
    %c0_i32 = arith.constant 0 : i32
    %c0_i32_0 = arith.constant 0 : i32
    %c0_i32_1 = arith.constant 0 : i32
    return %c0_i32, %c0_i32_0 : i32, i32
  }
}

</mosaic_0001>

<llo_original>
// kernel: t4attention_forward.1
$region0: #{t4attention_forward.1}
  #allocation0 [shape = 'u32[]', space=smem, size = 0x4, offset = 0x4, fixed_abs, tag = 'smem constant byte address 0x4 - core index']
  #allocation1 [shape = 'u32[144,128]{1,0:T(1,128)}', space=vmem, size = 0x12000, scoped, tag = 'internal scratch']
  #allocation2 [shape = 's32[1]{0}', space=sflag, size = 0x4, scoped, tag = 'scoped memory for t4attention_forward.1']
  #allocation3 [shape = 'u8[512]{0}', space=smem, size = 0x200, scoped, tag = 'prefetched SMEM operand 0']
  %s0 = inlined_call_operand.vmem [shape: s32[2], index: 0, kind: input, shape index: {}]
  %s1 = inlined_call_operand.vmem [shape: bf16[32,288], index: 1, kind: input, shape index: {}]
  %s2 = inlined_call_operand.vmem [shape: bf16[2,32], index: 2, kind: input, shape index: {}]
  %s3 = inlined_call_operand.vmem [shape: bf16[320,64], index: 3, kind: input, shape index: {}]
  %s4 = inlined_call_operand.vmem [shape: bf16[400,128], index: 4, kind: input, shape index: {}]
  %s5 = inlined_call_operand.vmem [shape: f32[8,128], index: 5, kind: input, shape index: {}]
  %s6 = inlined_call_operand.hbm [shape: f32[2,2], index: 6, kind: output, shape index: {}]
  %s7 = sld [smem:[#allocation0]]
  $region30: #{t4attention_forward.1} parent=0
    _
  %s9 = ssub.s32 1, %s7
  %s10 = scalar_select 0, %s9, %s7
  %s11 = sshll.u32 %s0, 4
  %s12 = int_to_ptr.vmem [resolvable:$true] %s11
  %14 = dma.vmem_to_smem %s12, 16, [#allocation3], [#allocation2]
  %15 = dma.done [#allocation2], 16
  %16 = sfence
  $region1: #{t4attention_forward.1} parent=0
    #allocation4 [shape = 'u8[1024]{0}', space=vmem, size = 0x400, scoped, tag = 'output window, operand 0, single buffered']
    #allocation5 [shape = 's32[1]{0}', space=sflag, size = 0x4, scoped, tag = 'scoped memory for t4attention_forward.1']
    %17 = vsyncpa [#allocation5], 0
    // Predicated region
    $region2: #{t4attention_forward.1} parent=1 // pred_check
      _
    $region3: #{t4attention_forward.1} parent=1 // pred_check_branch
      %19 = sbr.rel (0) target = $region5
    $region4: #{t4attention_forward.1} parent=1 // pred_region
      _
    $region5: #{t4attention_forward.1} parent=1 // pred_fallthru
      _
    // Predicated region
    $region6: #{t4attention_forward.1} parent=1 // pred_check
      _
    $region7: #{t4attention_forward.1} parent=1 // pred_check_branch
      %21 = sbr.rel (0) target = $region9
    $region8: #{t4attention_forward.1} parent=1 // pred_region
      _
    $region9: #{t4attention_forward.1} parent=1 // pred_fallthru
      _
    // Predicated region
    $region10: #{t4attention_forward.1} parent=1 // pred_check
      _
    $region11: #{t4attention_forward.1} parent=1 // pred_check_branch
      %23 = sbr.rel (0) target = $region13
    $region12: #{t4attention_forward.1} parent=1 // pred_region
      _
    $region13: #{t4attention_forward.1} parent=1 // pred_fallthru
      _
    // Predicated region
    $region14: #{t4attention_forward.1} parent=1 // pred_check
      _
    $region15: #{t4attention_forward.1} parent=1 // pred_check_branch
      %25 = sbr.rel (0) target = $region17
    $region16: #{t4attention_forward.1} parent=1 // pred_region
      _
    $region17: #{t4attention_forward.1} parent=1 // pred_fallthru
      _
    // Predicated region
    $region18: #{t4attention_forward.1} parent=1 // pred_check
      _
    $region19: #{t4attention_forward.1} parent=1 // pred_check_branch
      %27 = sbr.rel (0) target = $region21
    $region20: #{t4attention_forward.1} parent=1 // pred_region
      _
    $region21: #{t4attention_forward.1} parent=1 // pred_fallthru
      _
    %v29 = vld [vmem:[%s1] sm:$0xff]
    %v30 = vld [vmem:[%s1 + $0x8] sm:$0xf]
    %v31 = vld [vmem:[%s1 + $0xc] sm:$0xff]
    %v32 = vld [vmem:[%s1 + $0x14] sm:$0xf]
    %v33 = vld [vmem:[%s1 + $0x18] sm:$0xff]
    %v34 = vld [vmem:[%s1 + $0x20] sm:$0xf]
    %v35 = vld [vmem:[%s1 + $0x24] sm:$0xff]
    %v36 = vld [vmem:[%s1 + $0x2c] sm:$0xf]
    %v37 = vld [vmem:[%s3] sm:$0xf]
    %v38 = vld [vmem:[%s3 + $0x4] sm:$0xf]
    %v39 = vld [vmem:[%s3 + $0x8] sm:$0xf]
    %v40 = vld [vmem:[%s3 + $0xc] sm:$0xf]
    %v41 = vld [vmem:[%s3 + $0x10] sm:$0xf]
    %v42 = vld [vmem:[%s3 + $0x14] sm:$0xf]
    %v43 = vld [vmem:[%s3 + $0x18] sm:$0xf]
    %v44 = vld [vmem:[%s3 + $0x1c] sm:$0xf]
    %v45 = vld [vmem:[%s3 + $0x20] sm:$0xf]
    %v46 = vld [vmem:[%s3 + $0x24] sm:$0xf]
    %v47 = vld [vmem:[%s3 + $0x28] sm:$0xf]
    %v48 = vld [vmem:[%s3 + $0x2c] sm:$0xf]
    %v49 = vld [vmem:[%s3 + $0x30] sm:$0xf]
    %v50 = vld [vmem:[%s3 + $0x34] sm:$0xf]
    %v51 = vld [vmem:[%s3 + $0x38] sm:$0xf]
    %v52 = vld [vmem:[%s3 + $0x3c] sm:$0xf]
    %v53 = vld [vmem:[%s3 + $0x40] sm:$0xf]
    %v54 = vld [vmem:[%s3 + $0x44] sm:$0xf]
    %v55 = vld [vmem:[%s3 + $0x48] sm:$0xf]
    %v56 = vld [vmem:[%s3 + $0x4c] sm:$0xf]
    %v57 = vld [vmem:[%s3 + $0x50] sm:$0xf]
    %v58 = vld [vmem:[%s3 + $0x54] sm:$0xf]
    %v59 = vld [vmem:[%s3 + $0x58] sm:$0xf]
    %v60 = vld [vmem:[%s3 + $0x5c] sm:$0xf]
    %v61 = vld [vmem:[%s3 + $0x60] sm:$0xf]
    %v62 = vld [vmem:[%s3 + $0x64] sm:$0xf]
    %v63 = vld [vmem:[%s3 + $0x68] sm:$0xf]
    %v64 = vld [vmem:[%s3 + $0x6c] sm:$0xf]
    %v65 = vld [vmem:[%s3 + $0x70] sm:$0xf]
    %v66 = vld [vmem:[%s3 + $0x74] sm:$0xf]
    %v67 = vld [vmem:[%s3 + $0x78] sm:$0xf]
    %v68 = vld [vmem:[%s3 + $0x7c] sm:$0xf]
    %v69 = vld [vmem:[%s3 + $0x80] sm:$0xf]
    %v70 = vld [vmem:[%s3 + $0x84] sm:$0xf]
    %v71 = vld [vmem:[%s3 + $0x88] sm:$0xf]
    %v72 = vld [vmem:[%s3 + $0x8c] sm:$0xf]
    %v73 = vld [vmem:[%s5] sm:$0x1]
    %v74 = vlaneseq
    %v75 = vshrl.u32 %v74, 7
    %v76 = vsub.s32 0, %v75
    %v77 = vrot.slane %v73, %v76
    %v86 = vunpack.c.l.b16 %v29
    %v87 = vunpack.c.h.b16 %v29
    %v88 = vunpack.c.l.b16 %v30
    %v89 = vunpack.c.l.b16 %v31
    %v90 = vunpack.c.h.b16 %v31
    %v91 = vunpack.c.l.b16 %v32
    %v92 = vunpack.c.l.b16 %v33
    %v93 = vunpack.c.h.b16 %v33
    %v94 = vunpack.c.l.b16 %v34
    %v95 = vunpack.c.l.b16 %v35
    %v96 = vunpack.c.h.b16 %v35
    %v97 = vunpack.c.l.b16 %v36
    %v98 = vpack.c.b16 %v89, %v86
    %v99 = vpack.c.b16 %v90, %v87
    %v100 = vpack.c.b16 %v91, %v88
    %v101 = vpack.c.b16 %v95, %v92
    %v102 = vpack.c.b16 %v96, %v93
    %v103 = vpack.c.b16 %v97, %v94
    %v144 = vunpack.c.l.b16 %v37
    %v145 = vunpack.c.l.b16 %v38
    %v146 = vunpack.c.l.b16 %v39
    %v147 = vunpack.c.l.b16 %v40
    %v148 = vunpack.c.l.b16 %v41
    %v149 = vunpack.c.l.b16 %v42
    %v150 = vunpack.c.l.b16 %v43
    %v151 = vunpack.c.l.b16 %v44
    %v152 = vunpack.c.l.b16 %v45
    %v153 = vunpack.c.l.b16 %v46
    %v154 = vunpack.c.l.b16 %v47
    %v155 = vunpack.c.l.b16 %v48
    %v156 = vunpack.c.l.b16 %v49
    %v157 = vunpack.c.l.b16 %v50
    %v158 = vunpack.c.l.b16 %v51
    %v159 = vunpack.c.l.b16 %v52
    %v160 = vunpack.c.l.b16 %v53
    %v161 = vunpack.c.l.b16 %v54
    %v162 = vunpack.c.l.b16 %v55
    %v163 = vunpack.c.l.b16 %v56
    %v164 = vunpack.c.l.b16 %v57
    %v165 = vunpack.c.l.b16 %v58
    %v166 = vunpack.c.l.b16 %v59
    %v167 = vunpack.c.l.b16 %v60
    %v168 = vunpack.c.l.b16 %v61
    %v169 = vunpack.c.l.b16 %v62
    %v170 = vunpack.c.l.b16 %v63
    %v171 = vunpack.c.l.b16 %v64
    %v172 = vunpack.c.l.b16 %v65
    %v173 = vunpack.c.l.b16 %v66
    %v174 = vunpack.c.l.b16 %v67
    %v175 = vunpack.c.l.b16 %v68
    %v176 = vunpack.c.l.b16 %v69
    %v177 = vunpack.c.l.b16 %v70
    %v178 = vunpack.c.l.b16 %v71
    %v179 = vunpack.c.l.b16 %v72
    %v180 = vpack.c.b16 %v145, %v144
    %v181 = vpack.c.b16 %v147, %v146
    %v182 = vpack.c.b16 %v149, %v148
    %v183 = vpack.c.b16 %v151, %v150
    %v184 = vpack.c.b16 %v153, %v152
    %v185 = vpack.c.b16 %v155, %v154
    %v186 = vpack.c.b16 %v157, %v156
    %v187 = vpack.c.b16 %v159, %v158
    %v188 = vpack.c.b16 %v161, %v160
    %v189 = vpack.c.b16 %v163, %v162
    %v190 = vpack.c.b16 %v165, %v164
    %v191 = vpack.c.b16 %v167, %v166
    %v192 = vpack.c.b16 %v169, %v168
    %v193 = vpack.c.b16 %v171, %v170
    %v194 = vpack.c.b16 %v173, %v172
    %v195 = vpack.c.b16 %v175, %v174
    %v196 = vpack.c.b16 %v177, %v176
    %v197 = vpack.c.b16 %v179, %v178
    %vm216 = vcmask 261120
    %v218 = vsel %vm216, %v100, 0
    %v221 = vsel %vm216, %v103, 0
    %223 = vmatprep.subr.bf16.mxu0 0
    %224 = vmatpush1.bf16.msra.mxu0 %v180
    %225 = vmatprep.subr.bf16.mxu0 0
    %226 = vmatpush1.bf16.msra.mxu0 %v181
    %227 = vmatprep.subr.bf16.mxu0 0
    %228 = vmatpush1.bf16.msra.mxu0 %v182
    %229 = vmatprep.subr.bf16.mxu0 0
    %230 = vmatpush1.bf16.msra.mxu0 %v183
    %231 = vmatprep.subr.bf16.mxu0 0
    %232 = vmatpush1.bf16.msra.mxu0 %v184
    %233 = vmatprep.subr.bf16.mxu0 0
    %234 = vmatpush1.bf16.msra.mxu0 %v185
    %235 = vmatprep.subr.bf16.mxu0 0
    %236 = vmatpush1.bf16.msra.mxu0 %v186
    %237 = vmatprep.subr.bf16.mxu0 0
    %238 = vmatpush1.bf16.msra.mxu0 %v187
    %239 = vmatprep.subr.bf16.mxu0 0
    %240 = vmatpush1.bf16.msra.mxu0 %v188
    %241 = vmatprep.subr.bf16.mxu0 0
    %242 = vmatpush1.bf16.msra.mxu0 %v189
    %243 = vmatprep.subr.bf16.mxu0 0
    %244 = vmatpush1.bf16.msra.mxu0 %v190
    %245 = vmatprep.subr.bf16.mxu0 0
    %246 = vmatpush1.bf16.msra.mxu0 %v191
    %247 = vmatprep.subr.bf16.mxu0 0
    %248 = vmatpush1.bf16.msra.mxu0 %v192
    %249 = vmatprep.subr.bf16.mxu0 0
    %250 = vmatpush1.bf16.msra.mxu0 %v193
    %251 = vmatprep.subr.bf16.mxu0 0
    %252 = vmatpush1.bf16.msra.mxu0 %v194
    %253 = vmatprep.subr.bf16.mxu0 0
    %254 = vmatpush1.bf16.msra.mxu0 %v195
    %255 = vmatprep.mubr.bf16.mxu0 %v99
    %256 = vmatmul.mubr.bf16.gmra.mrb[0].mxu0 %v98
    %v257 = vpop.f32.mrb[0].mxu0
    %v258 = vadd.f32 %v77, %v257
    %v259 = vpop.f32.mrb[0].mxu0
    %v260 = vpop.f32.mrb[0].mxu0
    %v261 = vadd.f32 %v77, %v260
    %v262 = vpop.f32.mrb[0].mxu0
    %263 = vmatprep.mubr.bf16.mxu0 %v102
    %264 = vmatmul.mubr.bf16.gmra.mrb[0].mxu0 %v101
    %v265 = vpop.f32.mrb[0].mxu0
    %v266 = vadd.f32 %v77, %v265
    %v267 = vpop.f32.mrb[0].mxu0
    %v268 = vpop.f32.mrb[0].mxu0
    %v269 = vadd.f32 %v77, %v268
    %v270 = vpop.f32.mrb[0].mxu0
    %271 = vdwg.mxu0
    %272 = vmatprep.subr.bf16.mxu0 0
    %273 = vmatpush1.bf16.msra.mxu0 %v196
    %274 = vmatprep.subr.bf16.mxu0 0
    %275 = vmatpush1.bf16.msra.mxu0 %v197
    %276 = vmatprep.subr.bf16.mxu0 0
    %277 = vmatpush1.bf16.msra.mxu0 0
    %278 = vmatprep.subr.bf16.mxu0 0
    %279 = vmatpush1.bf16.msra.mxu0 0
    %280 = vmatprep.subr.bf16.mxu0 0
    %281 = vmatpush1.bf16.msra.mxu0 0
    %282 = vmatprep.subr.bf16.mxu0 0
    %283 = vmatpush1.bf16.msra.mxu0 0
    %284 = vmatprep.subr.bf16.mxu0 0
    %285 = vmatpush1.bf16.msra.mxu0 0
    %286 = vmatprep.subr.bf16.mxu0 0
    %287 = vmatpush1.bf16.msra.mxu0 0
    %288 = vmatprep.subr.bf16.mxu0 0
    %289 = vmatpush1.bf16.msra.mxu0 0
    %290 = vmatprep.subr.bf16.mxu0 0
    %291 = vmatpush1.bf16.msra.mxu0 0
    %292 = vmatprep.subr.bf16.mxu0 0
    %293 = vmatpush1.bf16.msra.mxu0 0
    %294 = vmatprep.subr.bf16.mxu0 0
    %295 = vmatpush1.bf16.msra.mxu0 0
    %296 = vmatprep.subr.bf16.mxu0 0
    %297 = vmatpush1.bf16.msra.mxu0 0
    %298 = vmatprep.subr.bf16.mxu0 0
    %299 = vmatpush1.bf16.msra.mxu0 0
    %300 = vmatprep.subr.bf16.mxu0 0
    %301 = vmatpush1.bf16.msra.mxu0 0
    %302 = vmatprep.subr.bf16.mxu0 0
    %303 = vmatpush1.bf16.msra.mxu0 0
    %304 = vmatprep.mubr.bf16.mxu0 0
    %305 = vmatmul.mubr.bf16.gmra.mrb[0].mxu0 %v218
    %v306 = vpop.f32.mrb[0].mxu0
    %v307 = vadd.f32 %v258, %v306
    %v308 = vpop.f32.mrb[0].mxu0
    %v309 = vpop.f32.mrb[0].mxu0
    %v310 = vadd.f32 %v261, %v309
    %v311 = vpop.f32.mrb[0].mxu0
    %312 = vmatprep.mubr.bf16.mxu0 0
    %313 = vmatmul.mubr.bf16.gmra.mrb[0].mxu0 %v221
    %v314 = vpop.f32.mrb[0].mxu0
    %v315 = vadd.f32 %v266, %v314
    %v316 = vpop.f32.mrb[0].mxu0
    %v317 = vpop.f32.mrb[0].mxu0
    %v318 = vadd.f32 %v269, %v317
    %v319 = vpop.f32.mrb[0].mxu0
    %320 = vdwg.mxu0
    %v321 = vlaneseq
    %v322 = vshrl.u32 %v321, 7
    %v323 = vadd.s32 %v322, 8
    %s324 = sld [smem:[#allocation3 + $0x1]]
    %v325 = vstv %s324
    %s326 = sld [smem:[#allocation3]]
    %v327 = vstv %s326
    %vm328 = vcmp.lt.s32.totalorder %v322, %v327
    %vm329 = vcmp.lt.s32.totalorder %v323, %v327
    %vm330 = vcmp.lt.s32.totalorder %v322, %v325
    %vm331 = vcmp.lt.s32.totalorder %v323, %v325
    %v332 = vsel %vm328, %v307, -1000000.0
    %v333 = vsel %vm329, %v310, -1000000.0
    %v334 = vsel %vm330, %v315, -1000000.0
    %v335 = vsel %vm331, %v318, -1000000.0
    %vm336 = vcmask 523520
    %v337 = vsel %vm336, %v332, -inf
    %v338 = vsel %vm336, %v333, -inf
    %v339 = vmax.f32 %v337, %v338
    %v340 = vrot.slane %v339, 4
    %v341 = vmax.f32 %v339, %v340
    %v342 = vrot.slane %v341, 2
    %v343 = vmax.f32 %v341, %v342
    %v344 = vrot.slane %v343, 1
    %v345 = vmax.f32 %v343, %v344
    %v346 = vsel %vm336, %v334, -inf
    %v347 = vsel %vm336, %v335, -inf
    %v348 = vmax.f32 %v346, %v347
    %v349 = vrot.slane %v348, 4
    %v350 = vmax.f32 %v348, %v349
    %v351 = vrot.slane %v350, 2
    %v352 = vmax.f32 %v350, %v351
    %v353 = vrot.slane %v352, 1
    %v354 = vmax.f32 %v352, %v353
    %v355 = vsub.f32 %v332, %v345
    %v356 = vsub.f32 %v333, %v345
    %v357 = vsub.f32 %v334, %v354
    %v358 = vsub.f32 %v335, %v354
    %v359 = vmul.f32 %v355, 1.442695
    %v360 = vpow.pop %v359
    %v361 = vmul.f32 %v356, 1.442695
    %v362 = vpow.pop %v361
    %v363 = vmul.f32 %v357, 1.442695
    %v364 = vpow.pop %v363
    %v365 = vmul.f32 %v358, 1.442695
    %v366 = vpow.pop %v365
    %371 = vrot.lane.b32.xlu0 %v360, 96
    %v372 = vpop.permute.xlu0 %371
    %373 = vrot.lane.b32.xlu0 %v362, 96
    %v374 = vpop.permute.xlu0 %373
    %375 = vrot.lane.b32.xlu0 %v364, 96
    %v376 = vpop.permute.xlu0 %375
    %377 = vrot.lane.b32.xlu0 %v366, 96
    %v378 = vpop.permute.xlu0 %377
    %v383 = vmul.f32 %v307, %v372
    %v384 = vmul.f32 %v310, %v374
    %v385 = vmul.f32 %v315, %v376
    %v386 = vmul.f32 %v318, %v378
    %v387 = vsel %vm216, %v383, 0.0
    %v388 = vsel %vm216, %v384, 0.0
    %v389 = vadd.f32 %v387, %v388
    %v390 = vrot.slane %v389, 4
    %v391 = vadd.f32 %v389, %v390
    %v392 = vrot.slane %v391, 2
    %v393 = vadd.f32 %v391, %v392
    %v394 = vrot.slane %v393, 1
    %v395 = vadd.f32 %v393, %v394
    %v396 = vsel %vm216, %v385, 0.0
    %v397 = vsel %vm216, %v386, 0.0
    %v398 = vadd.f32 %v396, %v397
    %v399 = vrot.slane %v398, 4
    %v400 = vadd.f32 %v398, %v399
    %v401 = vrot.slane %v400, 2
    %v402 = vadd.f32 %v400, %v401
    %v403 = vrot.slane %v402, 1
    %v404 = vadd.f32 %v402, %v403
    %v405 = vsel %vm336, %v360, 0.0
    %v406 = vsel %vm336, %v362, 0.0
    %v407 = vadd.f32 %v405, %v406
    %v408 = vrot.slane %v407, 4
    %v409 = vadd.f32 %v407, %v408
    %v410 = vrot.slane %v409, 2
    %v411 = vadd.f32 %v409, %v410
    %v412 = vrot.slane %v411, 1
    %v413 = vadd.f32 %v411, %v412
    %v414 = vsel %vm336, %v364, 0.0
    %v415 = vsel %vm336, %v366, 0.0
    %v416 = vadd.f32 %v414, %v415
    %v417 = vrot.slane %v416, 4
    %v418 = vadd.f32 %v416, %v417
    %v419 = vrot.slane %v418, 2
    %v420 = vadd.f32 %v418, %v419
    %v421 = vrot.slane %v420, 1
    %v422 = vadd.f32 %v420, %v421
    %v423 = vrcp.pop %v413
    %v424 = vrcp.pop %v422
    %427 = vrot.lane.b32.xlu0 %v423, 96
    %v428 = vpop.permute.xlu0 %427
    %429 = vrot.lane.b32.xlu0 %v424, 96
    %v430 = vpop.permute.xlu0 %429
    %v433 = vmul.f32 %v395, %v428
    %v434 = vmul.f32 %v404, %v430
    %v435 = vld [vmem:[%s2] sm:$0x1]
    %v436 = vld [vmem:[%s3 + $0x90] sm:$0xf]
    %v437 = vld [vmem:[%s3 + $0x94] sm:$0xf]
    %v438 = vld [vmem:[%s3 + $0x98] sm:$0xf]
    %v439 = vld [vmem:[%s3 + $0x9c] sm:$0xf]
    %v440 = vld [vmem:[%s5 + $0x1] sm:$0x1]
    %v441 = vlaneseq
    %v442 = vshrl.u32 %v441, 7
    %v443 = vsub.s32 0, %v442
    %v444 = vrot.slane %v440, %v443
    %v449 = vunpack.c.l.b16 %v436
    %v450 = vunpack.c.l.b16 %v437
    %v451 = vunpack.c.l.b16 %v438
    %v452 = vunpack.c.l.b16 %v439
    %v453 = vpack.c.b16 %v450, %v449
    %v454 = vpack.c.b16 %v452, %v451
    %v458 = vsel %vm216, %v435, 0
    %460 = vmatprep.subr.bf16.mxu0 0
    %461 = vmatpush1.bf16.msra.mxu0 %v453
    %462 = vmatprep.subr.bf16.mxu0 0
    %463 = vmatpush1.bf16.msra.mxu0 %v454
    %464 = vmatprep.subr.bf16.mxu0 0
    %465 = vmatpush1.bf16.msra.mxu0 0
    %466 = vmatprep.subr.bf16.mxu0 0
    %467 = vmatpush1.bf16.msra.mxu0 0
    %468 = vmatprep.subr.bf16.mxu0 0
    %469 = vmatpush1.bf16.msra.mxu0 0
    %470 = vmatprep.subr.bf16.mxu0 0
    %471 = vmatpush1.bf16.msra.mxu0 0
    %472 = vmatprep.subr.bf16.mxu0 0
    %473 = vmatpush1.bf16.msra.mxu0 0
    %474 = vmatprep.subr.bf16.mxu0 0
    %475 = vmatpush1.bf16.msra.mxu0 0
    %476 = vmatprep.subr.bf16.mxu0 0
    %477 = vmatpush1.bf16.msra.mxu0 0
    %478 = vmatprep.subr.bf16.mxu0 0
    %479 = vmatpush1.bf16.msra.mxu0 0
    %480 = vmatprep.subr.bf16.mxu0 0
    %481 = vmatpush1.bf16.msra.mxu0 0
    %482 = vmatprep.subr.bf16.mxu0 0
    %483 = vmatpush1.bf16.msra.mxu0 0
    %484 = vmatprep.subr.bf16.mxu0 0
    %485 = vmatpush1.bf16.msra.mxu0 0
    %486 = vmatprep.subr.bf16.mxu0 0
    %487 = vmatpush1.bf16.msra.mxu0 0
    %488 = vmatprep.subr.bf16.mxu0 0
    %489 = vmatpush1.bf16.msra.mxu0 0
    %490 = vmatprep.subr.bf16.mxu0 0
    %491 = vmatpush1.bf16.msra.mxu0 0
    %492 = vmatprep.mubr.bf16.mxu0 0
    %493 = vmatmul.mubr.bf16.gmra.mrb[0].mxu0 %v458
    %v494 = vpop.f32.mrb[0].mxu0
    %v495 = vadd.f32 %v444, %v494
    %v496 = vpop.f32.mrb[0].mxu0
    %v497 = vpop.f32.mrb[0].mxu0
    %v498 = vpop.f32.mrb[0].mxu0
    %499 = vdwg.mxu0
    %vm500 = vcmask 517376
    %v501 = vsel %vm500, %v495, -inf
    %502 = vmax.xlane.f32.xlu0 %v501
    %v503 = vpop.xlane.xlu0 %502
    %v504 = vsub.f32 %v495, %v503
    %v505 = vmul.f32 %v504, 1.442695
    %v506 = vpow.pop %v505
    %508 = vrot.lane.b32.xlu0 %v506, 96
    %v509 = vpop.permute.xlu0 %508
    %vm511 = vcmask 254976
    %v512 = vsel %vm511, %v509, 0.0
    %513 = vadd.xlane.f32.xlu0 %v512
    %v514 = vpop.xlane.xlu0 %513
    %v515 = vrcp.pop %v514
    %v516 = vmul.f32 %v506, %v515
    %518 = vrot.lane.b32.xlu0 %v516, 96
    %v519 = vpop.permute.xlu0 %518
    %v521 = vmul.f32 %v495, %v519
    %v523 = vrot.slane %v521, 1
    %v526 = vadd.f32 %v433, %v521
    %v527 = vadd.f32 %v434, %v523
    %v530 = vrot.slane %v527, 7
    %vm531 = vcmask 1041409
    %v532 = vsel %vm531, %v530, %v526
    %v534 = vsel %vm511, %v532, 0.0
    %535 = vadd.xlane.f32.xlu0 %v534
    %v536 = vpop.xlane.xlu0 %535
    %v537 = vrcp.pop 32.0
    %v538 = vmul.f32 %v536, %v537
    %v540 = vrot.slane %v538, 1
    %v543 = vsub.f32 %v526, %v538
    %v544 = vsub.f32 %v527, %v540
    %v545 = vmul.f32 %v543, %v543
    %v546 = vmul.f32 %v544, %v544
    %v549 = vrot.slane %v546, 7
    %v550 = vsel %vm531, %v549, %v545
    %v552 = vsel %vm511, %v550, 0.0
    %553 = vadd.xlane.f32.xlu0 %v552
    %v554 = vpop.xlane.xlu0 %553
    %v555 = vmul.f32 %v554, %v537
    %v556 = vadd.f32 %v555, 1e-05
    %v557 = vrsqrt.pop %v556
    %v559 = vrot.slane %v557, 1
    %v562 = vmul.f32 %v543, %v557
    %v563 = vmul.f32 %v544, %v559
    %v564 = vpack.c.bf16 %v562, %v562
    %v565 = vpack.c.bf16 %v563, %v563
    %v566 = vld [vmem:[%s4] sm:$0xf]
    %v567 = vld [vmem:[%s4 + $0x4] sm:$0xf]
    %v568 = vld [vmem:[%s4 + $0x8] sm:$0xf]
    %v569 = vld [vmem:[%s4 + $0xc] sm:$0xf]
    %v570 = vld [vmem:[%s4 + $0x10] sm:$0xf]
    %v571 = vld [vmem:[%s4 + $0x14] sm:$0xf]
    %v572 = vld [vmem:[%s4 + $0x18] sm:$0xf]
    %v573 = vld [vmem:[%s4 + $0x1c] sm:$0xf]
    %v574 = vld [vmem:[%s4 + $0x20] sm:$0xf]
    %v575 = vld [vmem:[%s4 + $0x24] sm:$0xf]
    %v576 = vld [vmem:[%s4 + $0x28] sm:$0xf]
    %v577 = vld [vmem:[%s4 + $0x2c] sm:$0xf]
    %v578 = vld [vmem:[%s4 + $0x30] sm:$0xf]
    %v579 = vld [vmem:[%s4 + $0x34] sm:$0xf]
    %v580 = vld [vmem:[%s4 + $0x38] sm:$0xf]
    %v581 = vld [vmem:[%s4 + $0x3c] sm:$0xf]
    %v582 = vld [vmem:[%s4 + $0x40] sm:$0xf]
    %v583 = vld [vmem:[%s4 + $0x44] sm:$0xf]
    %v584 = vld [vmem:[%s4 + $0x48] sm:$0xf]
    %v585 = vld [vmem:[%s4 + $0x4c] sm:$0xf]
    %v586 = vld [vmem:[%s4 + $0x50] sm:$0xf]
    %v587 = vld [vmem:[%s4 + $0x54] sm:$0xf]
    %v588 = vld [vmem:[%s4 + $0x58] sm:$0xf]
    %v589 = vld [vmem:[%s4 + $0x5c] sm:$0xf]
    %v590 = vld [vmem:[%s5 + $0x2] sm:$0x1]
    %v591 = vld [vmem:[%s5 + $0x3] sm:$0x1]
    %v592 = vlaneseq
    %v593 = vshrl.u32 %v592, 7
    %v594 = vsub.s32 0, %v593
    %v595 = vrot.slane %v590, %v594
    %v598 = vunpack.c.l.b16 %v564
    %v599 = vunpack.c.l.b16 %v565
    %v600 = vrot.slane %v599, 7
    %v601 = vsel %vm531, %v600, %v598
    %v602 = vpack.c.b16 %v601, %v601
    %v607 = vunpack.c.l.b16 %v566
    %v608 = vunpack.c.l.b16 %v567
    %v609 = vunpack.c.l.b16 %v568
    %v610 = vunpack.c.l.b16 %v569
    %v611 = vpack.c.b16 %v608, %v607
    %v612 = vpack.c.b16 %v610, %v609
    %v616 = vsel %vm216, %v602, 0
    %618 = vmatprep.subr.bf16.mxu0 0
    %619 = vmatpush1.bf16.msra.mxu0 %v611
    %620 = vmatprep.subr.bf16.mxu0 0
    %621 = vmatpush1.bf16.msra.mxu0 %v612
    %622 = vmatprep.subr.bf16.mxu0 0
    %623 = vmatpush1.bf16.msra.mxu0 0
    %624 = vmatprep.subr.bf16.mxu0 0
    %625 = vmatpush1.bf16.msra.mxu0 0
    %626 = vmatprep.subr.bf16.mxu0 0
    %627 = vmatpush1.bf16.msra.mxu0 0
    %628 = vmatprep.subr.bf16.mxu0 0
    %629 = vmatpush1.bf16.msra.mxu0 0
    %630 = vmatprep.subr.bf16.mxu0 0
    %631 = vmatpush1.bf16.msra.mxu0 0
    %632 = vmatprep.subr.bf16.mxu0 0
    %633 = vmatpush1.bf16.msra.mxu0 0
    %634 = vmatprep.subr.bf16.mxu0 0
    %635 = vmatpush1.bf16.msra.mxu0 0
    %636 = vmatprep.subr.bf16.mxu0 0
    %637 = vmatpush1.bf16.msra.mxu0 0
    %638 = vmatprep.subr.bf16.mxu0 0
    %639 = vmatpush1.bf16.msra.mxu0 0
    %640 = vmatprep.subr.bf16.mxu0 0
    %641 = vmatpush1.bf16.msra.mxu0 0
    %642 = vmatprep.subr.bf16.mxu0 0
    %643 = vmatpush1.bf16.msra.mxu0 0
    %644 = vmatprep.subr.bf16.mxu0 0
    %645 = vmatpush1.bf16.msra.mxu0 0
    %646 = vmatprep.subr.bf16.mxu0 0
    %647 = vmatpush1.bf16.msra.mxu0 0
    %648 = vmatprep.subr.bf16.mxu0 0
    %649 = vmatpush1.bf16.msra.mxu0 0
    %650 = vmatprep.mubr.bf16.mxu0 0
    %651 = vmatmul.mubr.bf16.gmra.mrb[0].mxu0 %v616
    %v652 = vpop.f32.mrb[0].mxu0
    %v653 = vadd.f32 %v595, %v652
    %v654 = vpop.f32.mrb[0].mxu0
    %v655 = vpop.f32.mrb[0].mxu0
    %v656 = vpop.f32.mrb[0].mxu0
    %657 = vdwg.mxu0
    %v658 = vmul.f32 %v653, 0.999995
    %v659 = vmax.f32 %v658, 0.0
    %v664 = vunpack.c.l.b16 %v570
    %v665 = vunpack.c.l.b16 %v571
    %v666 = vunpack.c.l.b16 %v572
    %v667 = vunpack.c.l.b16 %v573
    %v668 = vpack.c.b16 %v665, %v664
    %v669 = vpack.c.b16 %v667, %v666
    %672 = vmatprep.subr.bf16.mxu0 0
    %673 = vmatpush1.bf16.msra.mxu0 %v668
    %674 = vmatprep.subr.bf16.mxu0 0
    %675 = vmatpush1.bf16.msra.mxu0 %v669
    %676 = vmatprep.subr.bf16.mxu0 0
    %677 = vmatpush1.bf16.msra.mxu0 0
    %678 = vmatprep.subr.bf16.mxu0 0
    %679 = vmatpush1.bf16.msra.mxu0 0
    %680 = vmatprep.subr.bf16.mxu0 0
    %681 = vmatpush1.bf16.msra.mxu0 0
    %682 = vmatprep.subr.bf16.mxu0 0
    %683 = vmatpush1.bf16.msra.mxu0 0
    %684 = vmatprep.subr.bf16.mxu0 0
    %685 = vmatpush1.bf16.msra.mxu0 0
    %686 = vmatprep.subr.bf16.mxu0 0
    %687 = vmatpush1.bf16.msra.mxu0 0
    %688 = vmatprep.subr.bf16.mxu0 0
    %689 = vmatpush1.bf16.msra.mxu0 0
    %690 = vmatprep.subr.bf16.mxu0 0
    %691 = vmatpush1.bf16.msra.mxu0 0
    %692 = vmatprep.subr.bf16.mxu0 0
    %693 = vmatpush1.bf16.msra.mxu0 0
    %694 = vmatprep.subr.bf16.mxu0 0
    %695 = vmatpush1.bf16.msra.mxu0 0
    %696 = vmatprep.subr.bf16.mxu0 0
    %697 = vmatpush1.bf16.msra.mxu0 0
    %698 = vmatprep.subr.bf16.mxu0 0
    %699 = vmatpush1.bf16.msra.mxu0 0
    %700 = vmatprep.subr.bf16.mxu0 0
    %701 = vmatpush1.bf16.msra.mxu0 0
    %702 = vmatprep.subr.bf16.mxu0 0
    %703 = vmatpush1.bf16.msra.mxu0 0
    %704 = vmatprep.mubr.bf16.mxu0 0
    %705 = vmatmul.mubr.bf16.gmra.mrb[0].mxu0 %v616
    %v706 = vpop.f32.mrb[0].mxu0
    %v707 = vadd.f32 0.0, %v706
    %v708 = vpop.f32.mrb[0].mxu0
    %v709 = vpop.f32.mrb[0].mxu0
    %v710 = vpop.f32.mrb[0].mxu0
    %711 = vdwg.mxu0
    %v712 = vpack.c.bf16 %v659, %v659
    %v713 = vlaneseq
    %v714 = vshrl.u32 %v713, 7
    %v715 = vsub.s32 0, %v714
    %v716 = vrot.slane %v591, %v715
    %v733 = vunpack.c.l.b16 %v574
    %v734 = vunpack.c.l.b16 %v575
    %v735 = vunpack.c.l.b16 %v576
    %v736 = vunpack.c.l.b16 %v577
    %v737 = vunpack.c.l.b16 %v578
    %v738 = vunpack.c.l.b16 %v579
    %v739 = vunpack.c.l.b16 %v580
    %v740 = vunpack.c.l.b16 %v581
    %v741 = vunpack.c.l.b16 %v582
    %v742 = vunpack.c.l.b16 %v583
    %v743 = vunpack.c.l.b16 %v584
    %v744 = vunpack.c.l.b16 %v585
    %v745 = vunpack.c.l.b16 %v586
    %v746 = vunpack.c.l.b16 %v587
    %v747 = vunpack.c.l.b16 %v588
    %v748 = vunpack.c.l.b16 %v589
    %v749 = vpack.c.b16 %v734, %v733
    %v750 = vpack.c.b16 %v736, %v735
    %v751 = vpack.c.b16 %v738, %v737
    %v752 = vpack.c.b16 %v740, %v739
    %v753 = vpack.c.b16 %v742, %v741
    %v754 = vpack.c.b16 %v744, %v743
    %v755 = vpack.c.b16 %v746, %v745
    %v756 = vpack.c.b16 %v748, %v747
    %765 = vmatprep.subr.bf16.mxu0 0
    %766 = vmatpush1.bf16.msra.mxu0 %v749
    %767 = vmatprep.subr.bf16.mxu0 0
    %768 = vmatpush1.bf16.msra.mxu0 %v750
    %769 = vmatprep.subr.bf16.mxu0 0
    %770 = vmatpush1.bf16.msra.mxu0 %v751
    %771 = vmatprep.subr.bf16.mxu0 0
    %772 = vmatpush1.bf16.msra.mxu0 %v752
    %773 = vmatprep.subr.bf16.mxu0 0
    %774 = vmatpush1.bf16.msra.mxu0 %v753
    %775 = vmatprep.subr.bf16.mxu0 0
    %776 = vmatpush1.bf16.msra.mxu0 %v754
    %777 = vmatprep.subr.bf16.mxu0 0
    %778 = vmatpush1.bf16.msra.mxu0 %v755
    %779 = vmatprep.subr.bf16.mxu0 0
    %780 = vmatpush1.bf16.msra.mxu0 %v756
    %781 = vmatprep.subr.bf16.mxu0 0
    %782 = vmatpush1.bf16.msra.mxu0 0
    %783 = vmatprep.subr.bf16.mxu0 0
    %784 = vmatpush1.bf16.msra.mxu0 0
    %785 = vmatprep.subr.bf16.mxu0 0
    %786 = vmatpush1.bf16.msra.mxu0 0
    %787 = vmatprep.subr.bf16.mxu0 0
    %788 = vmatpush1.bf16.msra.mxu0 0
    %789 = vmatprep.subr.bf16.mxu0 0
    %790 = vmatpush1.bf16.msra.mxu0 0
    %791 = vmatprep.subr.bf16.mxu0 0
    %792 = vmatpush1.bf16.msra.mxu0 0
    %793 = vmatprep.subr.bf16.mxu0 0
    %794 = vmatpush1.bf16.msra.mxu0 0
    %795 = vmatprep.subr.bf16.mxu0 0
    %796 = vmatpush1.bf16.msra.mxu0 0
    %797 = vmatprep.mubr.bf16.mxu0 0
    %798 = vmatmul.mubr.bf16.gmra.mrb[0].mxu0 %v712
    %v799 = vpop.f32.mrb[0].mxu0
    %v800 = vadd.f32 %v716, %v799
    %v801 = vpop.f32.mrb[0].mxu0
    %v802 = vpop.f32.mrb[0].mxu0
    %v803 = vpop.f32.mrb[0].mxu0
    %804 = vdwg.mxu0
    %v805 = vadd.f32 %v800, %v707
    %v806 = vmax.f32 %v805, 0.0
    %v807 = vld [vmem:[%s4 + $0x60] sm:$0xf]
    %v808 = vld [vmem:[%s4 + $0x64] sm:$0xf]
    %v809 = vld [vmem:[%s4 + $0x68] sm:$0xf]
    %v810 = vld [vmem:[%s4 + $0x6c] sm:$0xf]
    %v811 = vld [vmem:[%s4 + $0x70] sm:$0xf]
    %v812 = vld [vmem:[%s4 + $0x74] sm:$0xf]
    %v813 = vld [vmem:[%s4 + $0x78] sm:$0xf]
    %v814 = vld [vmem:[%s4 + $0x7c] sm:$0xf]
    %v815 = vld [vmem:[%s4 + $0x80] sm:$0xf]
    %v816 = vld [vmem:[%s4 + $0x84] sm:$0xf]
    %v817 = vld [vmem:[%s4 + $0x88] sm:$0xf]
    %v818 = vld [vmem:[%s4 + $0x8c] sm:$0xf]
    %v819 = vld [vmem:[%s4 + $0x90] sm:$0xf]
    %v820 = vld [vmem:[%s4 + $0x94] sm:$0xf]
    %v821 = vld [vmem:[%s4 + $0x98] sm:$0xf]
    %v822 = vld [vmem:[%s4 + $0x9c] sm:$0xf]
    %v823 = vpack.c.bf16 %v806, %v806
    %v840 = vunpack.c.l.b16 %v807
    %v841 = vunpack.c.l.b16 %v808
    %v842 = vunpack.c.l.b16 %v809
    %v843 = vunpack.c.l.b16 %v810
    %v844 = vunpack.c.l.b16 %v811
    %v845 = vunpack.c.l.b16 %v812
    %v846 = vunpack.c.l.b16 %v813
    %v847 = vunpack.c.l.b16 %v814
    %v848 = vunpack.c.l.b16 %v815
    %v849 = vunpack.c.l.b16 %v816
    %v850 = vunpack.c.l.b16 %v817
    %v851 = vunpack.c.l.b16 %v818
    %v852 = vunpack.c.l.b16 %v819
    %v853 = vunpack.c.l.b16 %v820
    %v854 = vunpack.c.l.b16 %v821
    %v855 = vunpack.c.l.b16 %v822
    %v856 = vpack.c.b16 %v841, %v840
    %v857 = vpack.c.b16 %v843, %v842
    %v858 = vpack.c.b16 %v845, %v844
    %v859 = vpack.c.b16 %v847, %v846
    %v860 = vpack.c.b16 %v849, %v848
    %v861 = vpack.c.b16 %v851, %v850
    %v862 = vpack.c.b16 %v853, %v852
    %v863 = vpack.c.b16 %v855, %v854
    %872 = vmatprep.subr.bf16.mxu0 0
    %873 = vmatpush1.bf16.msra.mxu0 %v856
    %874 = vmatprep.subr.bf16.mxu0 0
    %875 = vmatpush1.bf16.msra.mxu0 %v857
    %876 = vmatprep.subr.bf16.mxu0 0
    %877 = vmatpush1.bf16.msra.mxu0 %v858
    %878 = vmatprep.subr.bf16.mxu0 0
    %879 = vmatpush1.bf16.msra.mxu0 %v859
    %880 = vmatprep.subr.bf16.mxu0 0
    %881 = vmatpush1.bf16.msra.mxu0 %v860
    %882 = vmatprep.subr.bf16.mxu0 0
    %883 = vmatpush1.bf16.msra.mxu0 %v861
    %884 = vmatprep.subr.bf16.mxu0 0
    %885 = vmatpush1.bf16.msra.mxu0 %v862
    %886 = vmatprep.subr.bf16.mxu0 0
    %887 = vmatpush1.bf16.msra.mxu0 %v863
    %888 = vmatprep.subr.bf16.mxu0 0
    %889 = vmatpush1.bf16.msra.mxu0 0
    %890 = vmatprep.subr.bf16.mxu0 0
    %891 = vmatpush1.bf16.msra.mxu0 0
    %892 = vmatprep.subr.bf16.mxu0 0
    %893 = vmatpush1.bf16.msra.mxu0 0
    %894 = vmatprep.subr.bf16.mxu0 0
    %895 = vmatpush1.bf16.msra.mxu0 0
    %896 = vmatprep.subr.bf16.mxu0 0
    %897 = vmatpush1.bf16.msra.mxu0 0
    %898 = vmatprep.subr.bf16.mxu0 0
    %899 = vmatpush1.bf16.msra.mxu0 0
    %900 = vmatprep.subr.bf16.mxu0 0
    %901 = vmatpush1.bf16.msra.mxu0 0
    %902 = vmatprep.subr.bf16.mxu0 0
    %903 = vmatpush1.bf16.msra.mxu0 0
    %904 = vmatprep.mubr.bf16.mxu0 0
    %905 = vmatmul.mubr.bf16.gmra.mrb[0].mxu0 %v823
    %v906 = vpop.f32.mrb[0].mxu0
    %v907 = vadd.f32 0.0, %v906
    %v908 = vpop.f32.mrb[0].mxu0
    %v909 = vpop.f32.mrb[0].mxu0
    %v910 = vpop.f32.mrb[0].mxu0
    %911 = vdwg.mxu0
    %v912 = vand.u32 2147483647, %v907
    %914 = vrot.lane.b32.xlu0 %v912, 64
    %v915 = vpop.permute.xlu0 %914
    %v917 = vadd.f32 %v907, %v915
    %v918 = vmul.f32 %v917, 0.5
    %v919 = vld [vmem:[%s4 + $0xa0] sm:$0xf]
    %v920 = vld [vmem:[%s4 + $0xa4] sm:$0xf]
    %v921 = vld [vmem:[%s4 + $0xa8] sm:$0xf]
    %v922 = vld [vmem:[%s4 + $0xac] sm:$0xf]
    %v923 = vld [vmem:[%s4 + $0xb0] sm:$0xf]
    %v924 = vld [vmem:[%s4 + $0xb4] sm:$0xf]
    %v925 = vld [vmem:[%s4 + $0xb8] sm:$0xf]
    %v926 = vld [vmem:[%s4 + $0xbc] sm:$0xf]
    %v927 = vld [vmem:[%s5 + $0x4] sm:$0x1]
    %v928 = vpack.c.bf16 %v918, %v918
    %v929 = vlaneseq
    %v930 = vshrl.u32 %v929, 7
    %v931 = vsub.s32 0, %v930
    %v932 = vrot.slane %v927, %v931
    %v941 = vunpack.c.l.b16 %v919
    %v942 = vunpack.c.l.b16 %v920
    %v943 = vunpack.c.l.b16 %v921
    %v944 = vunpack.c.l.b16 %v922
    %v945 = vunpack.c.l.b16 %v923
    %v946 = vunpack.c.l.b16 %v924
    %v947 = vunpack.c.l.b16 %v925
    %v948 = vunpack.c.l.b16 %v926
    %v949 = vpack.c.b16 %v942, %v941
    %v950 = vpack.c.b16 %v944, %v943
    %v951 = vpack.c.b16 %v946, %v945
    %v952 = vpack.c.b16 %v948, %v947
    %vm957 = vcmask 523264
    %v959 = vsel %vm957, %v928, 0
    %961 = vmatprep.subr.bf16.mxu0 0
    %962 = vmatpush1.bf16.msra.mxu0 %v949
    %963 = vmatprep.subr.bf16.mxu0 0
    %964 = vmatpush1.bf16.msra.mxu0 %v950
    %965 = vmatprep.subr.bf16.mxu0 0
    %966 = vmatpush1.bf16.msra.mxu0 %v951
    %967 = vmatprep.subr.bf16.mxu0 0
    %968 = vmatpush1.bf16.msra.mxu0 %v952
    %969 = vmatprep.subr.bf16.mxu0 0
    %970 = vmatpush1.bf16.msra.mxu0 0
    %971 = vmatprep.subr.bf16.mxu0 0
    %972 = vmatpush1.bf16.msra.mxu0 0
    %973 = vmatprep.subr.bf16.mxu0 0
    %974 = vmatpush1.bf16.msra.mxu0 0
    %975 = vmatprep.subr.bf16.mxu0 0
    %976 = vmatpush1.bf16.msra.mxu0 0
    %977 = vmatprep.subr.bf16.mxu0 0
    %978 = vmatpush1.bf16.msra.mxu0 0
    %979 = vmatprep.subr.bf16.mxu0 0
    %980 = vmatpush1.bf16.msra.mxu0 0
    %981 = vmatprep.subr.bf16.mxu0 0
    %982 = vmatpush1.bf16.msra.mxu0 0
    %983 = vmatprep.subr.bf16.mxu0 0
    %984 = vmatpush1.bf16.msra.mxu0 0
    %985 = vmatprep.subr.bf16.mxu0 0
    %986 = vmatpush1.bf16.msra.mxu0 0
    %987 = vmatprep.subr.bf16.mxu0 0
    %988 = vmatpush1.bf16.msra.mxu0 0
    %989 = vmatprep.subr.bf16.mxu0 0
    %990 = vmatpush1.bf16.msra.mxu0 0
    %991 = vmatprep.subr.bf16.mxu0 0
    %992 = vmatpush1.bf16.msra.mxu0 0
    %993 = vmatprep.mubr.bf16.mxu0 0
    %994 = vmatmul.mubr.bf16.gmra.mrb[0].mxu0 %v959
    %v995 = vpop.f32.mrb[0].mxu0
    %v996 = vadd.f32 %v932, %v995
    %v997 = vpop.f32.mrb[0].mxu0
    %v998 = vpop.f32.mrb[0].mxu0
    %v999 = vpop.f32.mrb[0].mxu0
    %1000 = vdwg.mxu0
    %v1001 = vmax.f32 %v996, 0.0
    %v1002 = vmul.f32 %v1001, 0.999995
    %v1003 = vld [vmem:[%s4 + $0xc0] sm:$0xf]
    %v1004 = vld [vmem:[%s4 + $0xc4] sm:$0xf]
    %v1005 = vld [vmem:[%s5 + $0x5] sm:$0x1]
    %v1006 = vpack.c.bf16 %v1002, %v1002
    %v1007 = vlaneseq
    %v1008 = vshrl.u32 %v1007, 7
    %v1009 = vsub.s32 0, %v1008
    %v1010 = vrot.slane %v1005, %v1009
    %v1013 = vunpack.c.l.b16 %v1003
    %v1014 = vunpack.c.l.b16 %v1004
    %v1015 = vpack.c.b16 %v1014, %v1013
    %vm1017 = vcmask 130048
    %v1019 = vsel %vm1017, %v1006, 0
    %1021 = vmatprep.subr.bf16.mxu0 0
    %1022 = vmatpush1.bf16.msra.mxu0 %v1015
    %1023 = vmatprep.subr.bf16.mxu0 0
    %1024 = vmatpush1.bf16.msra.mxu0 0
    %1025 = vmatprep.subr.bf16.mxu0 0
    %1026 = vmatpush1.bf16.msra.mxu0 0
    %1027 = vmatprep.subr.bf16.mxu0 0
    %1028 = vmatpush1.bf16.msra.mxu0 0
    %1029 = vmatprep.subr.bf16.mxu0 0
    %1030 = vmatpush1.bf16.msra.mxu0 0
    %1031 = vmatprep.subr.bf16.mxu0 0
    %1032 = vmatpush1.bf16.msra.mxu0 0
    %1033 = vmatprep.subr.bf16.mxu0 0
    %1034 = vmatpush1.bf16.msra.mxu0 0
    %1035 = vmatprep.subr.bf16.mxu0 0
    %1036 = vmatpush1.bf16.msra.mxu0 0
    %1037 = vmatprep.subr.bf16.mxu0 0
    %1038 = vmatpush1.bf16.msra.mxu0 0
    %1039 = vmatprep.subr.bf16.mxu0 0
    %1040 = vmatpush1.bf16.msra.mxu0 0
    %1041 = vmatprep.subr.bf16.mxu0 0
    %1042 = vmatpush1.bf16.msra.mxu0 0
    %1043 = vmatprep.subr.bf16.mxu0 0
    %1044 = vmatpush1.bf16.msra.mxu0 0
    %1045 = vmatprep.subr.bf16.mxu0 0
    %1046 = vmatpush1.bf16.msra.mxu0 0
    %1047 = vmatprep.subr.bf16.mxu0 0
    %1048 = vmatpush1.bf16.msra.mxu0 0
    %1049 = vmatprep.subr.bf16.mxu0 0
    %1050 = vmatpush1.bf16.msra.mxu0 0
    %1051 = vmatprep.subr.bf16.mxu0 0
    %1052 = vmatpush1.bf16.msra.mxu0 0
    %1053 = vmatprep.mubr.bf16.mxu0 0
    %1054 = vmatmul.mubr.bf16.gmra.mrb[0].mxu0 %v1019
    %v1055 = vpop.f32.mrb[0].mxu0
    %v1056 = vadd.f32 %v1010, %v1055
    %v1057 = vpop.f32.mrb[0].mxu0
    %v1058 = vpop.f32.mrb[0].mxu0
    %v1059 = vpop.f32.mrb[0].mxu0
    %1060 = vdwg.mxu0
    %vm1061 = vcmask 9216
    %1062 = vst.msk [vmem:[#allocation4] sm:$0x3] %vm1061, %v1056
    // Predicated region
    $region22: #{t4attention_forward.1} parent=1 // pred_check
      _
    $region23: #{t4attention_forward.1} parent=1 // pred_check_branch
      %1064 = sbr.rel (0) target = $region25
    $region24: #{t4attention_forward.1} parent=1 // pred_region
      %s1066 = ssub.s32 32, 32
      %1067 = vsyncadd [#allocation5], %s1066
      %s1069 = sshll.u32 [#allocation4], 4
      %s1070 = int_to_ptr.vmem [resolvable:$true] %s1069
      %1072 = dma.vmem_to_hbm [thread:$0]  %s1070, 32, %s6, [#allocation5]
    $region25: #{t4attention_forward.1} parent=1 // pred_fallthru
      _
    // Predicated region
    $region26: #{t4attention_forward.1} parent=1 // pred_check
      _
    $region27: #{t4attention_forward.1} parent=1 // pred_check_branch
      %1074 = sbr.rel (0) target = $region29
    $region28: #{t4attention_forward.1} parent=1 // pred_region
      %1075 = dma.done [#allocation5], 32
    $region29: #{t4attention_forward.1} parent=1 // pred_fallthru
      _
    %1076 = vsyncpa [#allocation5], 1

</llo_original>
